<compile_context>
chip_gen: v5e
topology: v5e:2x2
jax: 0.10.0
libtpu: 0.0.40
codegen_flags: <defaults>
</compile_context>

<pallas_src>
import numpy as np
import jax
import jax.numpy as jnp
from jax.experimental import pallas as pl
from jax.experimental.pallas import tpu as pltpu


# --------------------------------------------------------------------------
# Deterministic parameter construction (mirrors _get_stft_kernels).
# --------------------------------------------------------------------------
def get_stft_kernels(nfft, window="hanning"):
    nfft = int(nfft)
    assert nfft % 2 == 0
    n_freq = nfft // 2 + 1

    freq = np.arange(n_freq, dtype=np.float64)[:, None]
    time = np.arange(nfft, dtype=np.float64)[None, :]
    kernels = np.exp(-1j * (2.0 * np.pi * time * freq) / float(nfft))

    if window == "hanning":
        # scipy.signal.get_window('hanning', nfft) -> periodic Hann window
        n = np.arange(nfft, dtype=np.float64)
        win = (0.5 - 0.5 * np.cos(2.0 * np.pi * n / nfft))[None, :]
    else:
        win = np.ones((1, nfft), dtype=np.float64)

    kernels = kernels * win
    return (np.real(kernels).astype(np.float32),
            np.imag(kernels).astype(np.float32))


def _round_up(x, m):
    return ((x + m - 1) // m) * m


def _vmem_need_bytes(K, R_pad, hop, F2, tile_T, in_isz, out_isz):
    """Rough per-step VMEM footprint (double-buffered streams + temporaries)."""
    w = K * R_pad * hop * in_isz                 # resident packed weights
    sig = hop * tile_T * in_isz                  # one signal block
    outs = (2 * F2 + 1) * tile_T * out_isz       # the three output blocks
    acc = R_pad * tile_T * 4                     # f32 MXU accumulator temporary
    n_sig = 2 if K > 1 else 1
    return 2 * w + 2 * n_sig * sig + 2 * outs + acc + 2 * sig


# --------------------------------------------------------------------------
# Pallas kernel: per (batch, time-tile) grid cell, rebuild the frame tile from
# two lane-dense signal blocks and run one packed MXU matmul per hop-chunk.
# --------------------------------------------------------------------------
def _stft_pallas(w_pack, sig, *, K, R_pad, hop, F2, A1, A2, tile_T, n_tiles,
                 out_dtype, vmem_limit_bytes):
    """w_pack: (K, R_pad, hop).  sig: (B, hop, (n_tiles+1)*tile_T).

    Returns (ac, magn, phase) with shapes (B,1,T_pad), (B,1,F2,T_pad) x2.
    """
    B = sig.shape[0]
    T_pad = n_tiles * tile_T

    def kernel(*refs):
        if K > 1:
            w_ref, s0_ref, s1_ref, ac_ref, magn_ref, phase_ref = refs
        else:
            w_ref, s0_ref, ac_ref, magn_ref, phase_ref = refs

        b0 = s0_ref[0]                                              # (hop, tile_T)
        acc = jnp.dot(w_ref[0], b0, preferred_element_type=jnp.float32)
        if K > 1:
            # Aligned lane concat, then static lane-shifted windows per chunk k:
            # frames[k*hop:(k+1)*hop, t] = sig[:, tile_start + t + k].
            wide = jnp.concatenate([b0, s1_ref[0]], axis=1)         # (hop, 2*tile_T)
            for k in range(1, K):
                rhs = wide[:, k:k + tile_T]
                acc = acc + jnp.dot(w_ref[k], rhs,
                                    preferred_element_type=jnp.float32)

        # Packed rows: [0]=DC -> ac, [A1:A1+F2]=real -> magn, [A2:A2+F2]=-imag -> phase.
        # Segment starts are multiples of 16 -> sublane-aligned, relayout-free stores.
        ac_ref[0] = acc[0:1].astype(ac_ref.dtype)
        magn_ref[0, 0] = acc[A1:A1 + F2].astype(magn_ref.dtype)
        phase_ref[0, 0] = acc[A2:A2 + F2].astype(phase_ref.dtype)

    in_specs = [
        pl.BlockSpec((K, R_pad, hop), lambda b, tt: (0, 0, 0)),       # resident weights
        pl.BlockSpec((1, hop, tile_T), lambda b, tt: (b, 0, tt)),      # signal cols (tile tt)
    ]
    operands = [w_pack, sig]
    if K > 1:
        # next tile's columns supply the frame overlap at the tile boundary
        in_specs.append(pl.BlockSpec((1, hop, tile_T), lambda b, tt: (b, 0, tt + 1)))
        operands.append(sig)

    out_shape = (
        jax.ShapeDtypeStruct((B, 1, T_pad), out_dtype),               # ac
        jax.ShapeDtypeStruct((B, 1, F2, T_pad), out_dtype),           # magn
        jax.ShapeDtypeStruct((B, 1, F2, T_pad), out_dtype),           # phase
    )
    out_specs = (
        pl.BlockSpec((1, 1, tile_T), lambda b, tt: (b, 0, tt)),
        pl.BlockSpec((1, 1, F2, tile_T), lambda b, tt: (b, 0, 0, tt)),
        pl.BlockSpec((1, 1, F2, tile_T), lambda b, tt: (b, 0, 0, tt)),
    )

    in_isz = jnp.dtype(sig.dtype).itemsize
    out_isz = jnp.dtype(out_dtype).itemsize
    n_sig = 2 if K > 1 else 1
    cost = pl.CostEstimate(
        flops=2 * B * n_tiles * tile_T * R_pad * K * hop,
        transcendentals=0,
        bytes_accessed=(K * R_pad * hop * in_isz
                        + B * n_tiles * n_sig * hop * tile_T * in_isz
                        + B * n_tiles * (2 * F2 + 1) * tile_T * out_isz),
    )

    return pl.pallas_call(
        kernel,
        out_shape=out_shape,
        grid_spec=pltpu.PrefetchScalarGridSpec(
            num_scalar_prefetch=0,
            grid=(B, n_tiles),
            in_specs=in_specs,
            out_specs=out_specs,
        ),
        compiler_params=pltpu.CompilerParams(
            dimension_semantics=("parallel", "parallel"),
            vmem_limit_bytes=vmem_limit_bytes,
        ),
        cost_estimate=cost,
    )(*operands)


# --------------------------------------------------------------------------
# Full forward (signal-sized glue in plain JAX, hot path in Pallas).
# --------------------------------------------------------------------------
def stft_forward(sample, real_kernels, imag_kernels, hop_length, *,
                 max_tile_T=1024, compute_dtype=jnp.bfloat16,
                 out_dtype=jnp.float32):
    """sample: (B, L).  Returns (magn, phase, ac) matching the PyTorch module.

    compute_dtype: dtype fed to the MXU (bf16 halves HBM reads; use jnp.float32
      for bit-closer parity with the f32 conv2d if phases feed a sensitive loss).
    out_dtype: dtype of magn/phase/ac (float32 matches PyTorch; bfloat16 halves
      the dominant output HBM stream if downstream tolerates it).
    """
    sample = jnp.asarray(sample)
    B, L = sample.shape
    hop = int(hop_length)
    n_freq, nfft = real_kernels.shape
    F2 = n_freq - 1
    T = (L - nfft) // hop + 1
    assert T >= 1, "signal shorter than one frame"

    K = -(-nfft // hop)                     # ceil(nfft / hop) hop-chunks per frame

    in_isz = jnp.dtype(compute_dtype).itemsize
    out_isz = jnp.dtype(out_dtype).itemsize

    # Packed-weight row layout: 16-row-aligned segments (bf16 sublane packing +
    # relayout-free in-kernel slices).  NOTE: the in-kernel slices [0], [A1:A1+F2],
    # [A2:A2+F2] must match this packing.
    SEG = 16
    A1 = SEG
    A2 = SEG + _round_up(F2, SEG)
    R_pad = A2 + _round_up(F2, SEG)

    # Adaptive lane-dense time tile (review: 512-1024 reaches the HBM plateau).
    t_ceil = _round_up(T, 128)
    tile_T = min(int(max_tile_T), t_ceil)
    if B == 1 and t_ceil >= 256:
        # keep >= 2 parallel grid cells so both v7x TensorCores get work
        tile_T = min(tile_T, _round_up((t_ceil + 1) // 2, 128))
    while (tile_T > 128 and
           _vmem_need_bytes(K, R_pad, hop, F2, tile_T, in_isz, out_isz) > 40 * 2**20):
        tile_T = max(128, _round_up(tile_T // 2, 128))   # stay within v7x 64 MiB VMEM
    assert K <= tile_T, "hop too small relative to nfft for this tiling"

    n_tiles = -(-T // tile_T)
    T_pad = n_tiles * tile_T

    need = _vmem_need_bytes(K, R_pad, hop, F2, tile_T, in_isz, out_isz)
    vmem_limit = int(min(max(2 * need, 24 * 2**20), 48 * 2**20))

    # ---- packed weights (K, R_pad, hop): row 0 = real DC, [A1:A1+F2] = real 1..,
    #      [A2:A2+F2] = -imag 1.. (phase negation folded in); zeros elsewhere. -----
    wr = np.asarray(real_kernels, np.float32)
    wi = np.asarray(imag_kernels, np.float32)
    w_full = np.zeros((R_pad, K * hop), np.float32)
    w_full[0, :nfft] = wr[0]
    w_full[A1:A1 + F2, :nfft] = wr[1:]
    w_full[A2:A2 + F2, :nfft] = -wi[1:]
    w_pack = jnp.asarray(w_full.reshape(R_pad, K, hop).transpose(1, 0, 2),
                         dtype=compute_dtype)                       # (K, R_pad, hop)

    # ---- signal -> column layout sig[b, j, c] = sample[b, c*hop + j] -------------
    # Signal-sized pad/reshape/transpose only; no frame gather, no ~2x replication.
    n_cols = (n_tiles + 1) * tile_T          # +1 tile so the "next tile" block exists
    L_need = n_cols * hop
    x = sample.astype(compute_dtype)
    if L_need >= L:
        x = jnp.pad(x, ((0, 0), (0, L_need - L)))
    else:
        x = x[:, :L_need]                    # dropped tail is beyond the last frame
    sig = jnp.transpose(x.reshape(B, n_cols, hop), (0, 2, 1))       # (B, hop, n_cols)

    ac, magn, phase = _stft_pallas(
        w_pack, sig, K=K, R_pad=R_pad, hop=hop, F2=F2, A1=A1, A2=A2,
        tile_T=tile_T, n_tiles=n_tiles, out_dtype=out_dtype,
        vmem_limit_bytes=vmem_limit)

    if T_pad != T:                           # only trailing time padding is sliced
        ac, magn, phase = ac[:, :, :T], magn[..., :T], phase[..., :T]
    return magn, phase, ac


if __name__ == "__main__":
    # Small shapes consistent with the module.
    nfft = 64
    hop_length = 32
    B, L = 2, 256

    real_k, imag_k = get_stft_kernels(nfft, window="hanning")

    key = jax.random.PRNGKey(0)
    sample = jax.random.normal(key, (B, L), dtype=jnp.float32)

    magn, phase, ac = stft_forward(sample, real_k, imag_k, hop_length)
    jax.block_until_ready((magn, phase, ac))

    # ---------------- references ----------------
    n_freq = nfft // 2 + 1
    T = (L - nfft) // hop_length + 1
    idx = jnp.arange(T)[:, None] * hop_length + jnp.arange(nfft)[None, :]
    frames = sample[:, idx]                                         # (B, T, nfft) f32

    rk = jnp.asarray(real_k)
    ik = jnp.asarray(imag_k)

    # (1) matched-precision reference: same bf16 rounding of inputs as the kernel,
    #     f32 accumulation -> tight tolerance.
    frames_c = frames.astype(jnp.bfloat16).astype(jnp.float32)
    rk_c = rk.astype(jnp.bfloat16).astype(jnp.float32)
    ik_c = ik.astype(jnp.bfloat16).astype(jnp.float32)
    ref_r_c = jnp.einsum("btn,fn->bft", frames_c, rk_c)             # (B, n_freq, T)
    ref_i_c = jnp.einsum("btn,fn->bft", frames_c, ik_c)
    np.testing.assert_allclose(np.asarray(magn), np.asarray(ref_r_c[:, None, 1:, :]),
                               rtol=1e-3, atol=1e-3)
    np.testing.assert_allclose(np.asarray(phase), np.asarray(-ref_i_c[:, None, 1:, :]),
                               rtol=1e-3, atol=1e-3)
    np.testing.assert_allclose(np.asarray(ac), np.asarray(ref_r_c[:, None, 0, :]),
                               rtol=1e-3, atol=1e-3)

    # (2) full-f32 semantic reference (loose tolerance: kernel inputs are bf16).
    ref_r = jnp.einsum("btn,fn->bft", frames, rk)
    ref_i = jnp.einsum("btn,fn->bft", frames, ik)
    np.testing.assert_allclose(np.asarray(magn), np.asarray(ref_r[:, None, 1:, :]),
                               rtol=5e-2, atol=2.5e-1)
    np.testing.assert_allclose(np.asarray(phase), np.asarray(-ref_i[:, None, 1:, :]),
                               rtol=5e-2, atol=2.5e-1)
    np.testing.assert_allclose(np.asarray(ac), np.asarray(ref_r[:, None, 0, :]),
                               rtol=5e-2, atol=2.5e-1)

    assert magn.shape == (B, 1, n_freq - 1, T)
    assert phase.shape == (B, 1, n_freq - 1, T)
    assert ac.shape == (B, 1, T)

    print("KERNEL_OK")
</pallas_src>

<mosaic_0001>
module attributes {stable_mosaic.version = 11 : i64} {
  func.func @kernel(%arg0: i32, %arg1: i32, %arg2: memref<2x80x32xbf16, #tpu.memory_space<vmem>>, %arg3: memref<1x32x128xbf16, #tpu.memory_space<vmem>>, %arg4: memref<1x32x128xbf16, #tpu.memory_space<vmem>>, %arg5: memref<1x1x128xf32, #tpu.memory_space<vmem>>, %arg6: memref<1x1x32x128xf32, #tpu.memory_space<vmem>>, %arg7: memref<1x1x32x128xf32, #tpu.memory_space<vmem>>) attributes {dimension_semantics = [#tpu.dimension_semantics<parallel>, #tpu.dimension_semantics<parallel>], iteration_bounds = array<i64: 2, 1>, scalar_prefetch = 0 : i64, scratch_operands = 0 : i64, tpu.core_type = #tpu.core_type<tc>, window_params = [{pipeline_mode = #tpu.pipeline_mode<synchronous>, transform_indices = @transform_0, window_bounds = array<i64: 2, 80, 32>}, {transform_indices = @transform_1, window_bounds = array<i64: 1, 32, 128>}, {transform_indices = @transform_2, window_bounds = array<i64: 1, 32, 128>}, {transform_indices = @transform_3, window_bounds = array<i64: 1, 1, 128>}, {transform_indices = @transform_4, window_bounds = array<i64: 1, 1, 32, 128>}, {transform_indices = @transform_5, window_bounds = array<i64: 1, 1, 32, 128>}]} {
    %c0 = arith.constant 0 : index
    %c0_0 = arith.constant 0 : index
    %c0_1 = arith.constant 0 : index
    %0 = vector.load %arg3[%c0, %c0_0, %c0_1] : memref<1x32x128xbf16, #tpu.memory_space<vmem>>, vector<1x32x128xbf16>
    %1 = vector.shape_cast %0 : vector<1x32x128xbf16> to vector<32x128xbf16>
    %c0_2 = arith.constant 0 : index
    %c0_3 = arith.constant 0 : index
    %c0_4 = arith.constant 0 : index
    %2 = vector.load %arg2[%c0_2, %c0_3, %c0_4] : memref<2x80x32xbf16, #tpu.memory_space<vmem>>, vector<1x80x32xbf16>
    %3 = vector.shape_cast %2 : vector<1x80x32xbf16> to vector<80x32xbf16>
    %cst = arith.constant dense<0.000000e+00> : vector<80x128xf32>
    %4 = tpu.matmul %3, %1, %cst {dimension_numbers = #tpu.dot_dimension_numbers<[1], [0], [0], [1], [0, 0, 1, 1], [], []>} : vector<80x32xbf16>, vector<32x128xbf16>, vector<80x128xf32> -> vector<80x128xf32>
    %c0_5 = arith.constant 0 : index
    %c0_6 = arith.constant 0 : index
    %c0_7 = arith.constant 0 : index
    %5 = vector.load %arg4[%c0_5, %c0_6, %c0_7] : memref<1x32x128xbf16, #tpu.memory_space<vmem>>, vector<1x32x128xbf16>
    %6 = vector.shape_cast %5 : vector<1x32x128xbf16> to vector<32x128xbf16>
    %7 = tpu.concatenate %1, %6 in 1 : vector<32x128xbf16>, vector<32x128xbf16> -> vector<32x256xbf16>
    %8 = vector.extract_strided_slice %7 {offsets = [0, 1], sizes = [32, 128], strides = [1, 1]} : vector<32x256xbf16> to vector<32x128xbf16>
    %c1 = arith.constant 1 : index
    %c0_8 = arith.constant 0 : index
    %c0_9 = arith.constant 0 : index
    %9 = vector.load %arg2[%c1, %c0_8, %c0_9] : memref<2x80x32xbf16, #tpu.memory_space<vmem>>, vector<1x80x32xbf16>
    %10 = vector.shape_cast %9 : vector<1x80x32xbf16> to vector<80x32xbf16>
    %cst_10 = arith.constant dense<0.000000e+00> : vector<80x128xf32>
    %11 = tpu.matmul %10, %8, %cst_10 {dimension_numbers = #tpu.dot_dimension_numbers<[1], [0], [0], [1], [0, 0, 1, 1], [], []>} : vector<80x32xbf16>, vector<32x128xbf16>, vector<80x128xf32> -> vector<80x128xf32>
    %12 = arith.addf %4, %11 : vector<80x128xf32>
    %13 = vector.extract_strided_slice %12 {offsets = [0, 0], sizes = [1, 128], strides = [1, 1]} : vector<80x128xf32> to vector<1x128xf32>
    %c0_11 = arith.constant 0 : index
    %c0_12 = arith.constant 0 : index
    %c0_13 = arith.constant 0 : index
    %14 = vector.load %arg5[%c0_11, %c0_12, %c0_13] : memref<1x1x128xf32, #tpu.memory_space<vmem>>, vector<1x1x128xf32>
    %15 = vector.shape_cast %14 : vector<1x1x128xf32> to vector<1x128xf32>
    %16 = vector.shape_cast %13 : vector<1x128xf32> to vector<1x1x128xf32>
    tpu.vector_store %arg5[%c0_11, %c0_12, %c0_13], %16 {strides = array<i32>} : memref<1x1x128xf32, #tpu.memory_space<vmem>>, vector<1x1x128xf32>,
    %17 = vector.extract_strided_slice %12 {offsets = [16, 0], sizes = [32, 128], strides = [1, 1]} : vector<80x128xf32> to vector<32x128xf32>
    %c0_14 = arith.constant 0 : index
    %c0_15 = arith.constant 0 : index
    %c0_16 = arith.constant 0 : index
    %c0_17 = arith.constant 0 : index
    %18 = vector.load %arg6[%c0_14, %c0_15, %c0_16, %c0_17] : memref<1x1x32x128xf32, #tpu.memory_space<vmem>>, vector<1x1x32x128xf32>
    %19 = vector.shape_cast %18 : vector<1x1x32x128xf32> to vector<32x128xf32>
    %20 = vector.shape_cast %17 : vector<32x128xf32> to vector<1x1x32x128xf32>
    tpu.vector_store %arg6[%c0_14, %c0_15, %c0_16, %c0_17], %20 {strides = array<i32>} : memref<1x1x32x128xf32, #tpu.memory_space<vmem>>, vector<1x1x32x128xf32>,
    %21 = vector.extract_strided_slice %12 {offsets = [48, 0], sizes = [32, 128], strides = [1, 1]} : vector<80x128xf32> to vector<32x128xf32>
    %c0_18 = arith.constant 0 : index
    %c0_19 = arith.constant 0 : index
    %c0_20 = arith.constant 0 : index
    %c0_21 = arith.constant 0 : index
    %22 = vector.load %arg7[%c0_18, %c0_19, %c0_20, %c0_21] : memref<1x1x32x128xf32, #tpu.memory_space<vmem>>, vector<1x1x32x128xf32>
    %23 = vector.shape_cast %22 : vector<1x1x32x128xf32> to vector<32x128xf32>
    %24 = vector.shape_cast %21 : vector<32x128xf32> to vector<1x1x32x128xf32>
    tpu.vector_store %arg7[%c0_18, %c0_19, %c0_20, %c0_21], %24 {strides = array<i32>} : memref<1x1x32x128xf32, #tpu.memory_space<vmem>>, vector<1x1x32x128xf32>,
    return
  }
  func.func @transform_0(%arg0: i32, %arg1: i32) -> (i32, i32, i32) {
    %c0_i32 = arith.constant 0 : i32
    %c0_i32_0 = arith.constant 0 : i32
    %c0_i32_1 = arith.constant 0 : i32
    %c0_i32_2 = arith.constant 0 : i32
    return %c0_i32, %c0_i32_0, %c0_i32_1 : i32, i32, i32
  }
  func.func @transform_1(%arg0: i32, %arg1: i32) -> (i32, i32, i32) {
    %c0_i32 = arith.constant 0 : i32
    %c0_i32_0 = arith.constant 0 : i32
    return %arg0, %c0_i32, %arg1 : i32, i32, i32
  }
  func.func @transform_2(%arg0: i32, %arg1: i32) -> (i32, i32, i32) {
    %c1_i32 = arith.constant 1 : i32
    %0 = arith.addi %arg1, %c1_i32 : i32
    %c0_i32 = arith.constant 0 : i32
    %c0_i32_0 = arith.constant 0 : i32
    return %arg0, %c0_i32, %0 : i32, i32, i32
  }
  func.func @transform_3(%arg0: i32, %arg1: i32) -> (i32, i32, i32) {
    %c0_i32 = arith.constant 0 : i32
    %c0_i32_0 = arith.constant 0 : i32
    return %arg0, %c0_i32, %arg1 : i32, i32, i32
  }
  func.func @transform_4(%arg0: i32, %arg1: i32) -> (i32, i32, i32, i32) {
    %c0_i32 = arith.constant 0 : i32
    %c0_i32_0 = arith.constant 0 : i32
    %c0_i32_1 = arith.constant 0 : i32
    return %arg0, %c0_i32, %c0_i32_0, %arg1 : i32, i32, i32, i32
  }
  func.func @transform_5(%arg0: i32, %arg1: i32) -> (i32, i32, i32, i32) {
    %c0_i32 = arith.constant 0 : i32
    %c0_i32_0 = arith.constant 0 : i32
    %c0_i32_1 = arith.constant 0 : i32
    return %arg0, %c0_i32, %c0_i32_0, %arg1 : i32, i32, i32, i32
  }
}

</mosaic_0001>

<llo_original>
// kernel: tpu_custom_call.1
$region0: #{tpu_custom_call.1}
  #allocation0 [shape = 'u32[]', space=smem, size = 0x4, offset = 0x4, fixed_abs, tag = 'smem constant byte address 0x4 - core index']
  #allocation1 [shape = 'u32[72,128]{1,0:T(1,128)}', space=vmem, size = 0x9000, scoped, tag = 'internal scratch']
  %s0 = inlined_call_operand.vmem [shape: bf16[2,80,32], index: 0, kind: input, shape index: {}]
  %s1 = inlined_call_operand.vmem [shape: bf16[2,32,256], index: 1, kind: input, shape index: {}]
  %s2 = inlined_call_operand.hbm [shape: bf16[2,32,256], index: 2, kind: input, shape index: {}]
  %s3 = inlined_call_operand.hbm [shape: f32[2,1,128], index: 3, kind: output, shape index: {0}]
  %s4 = inlined_call_operand.hbm [shape: f32[2,1,32,128], index: 4, kind: output, shape index: {1}]
  %s5 = inlined_call_operand.hbm [shape: f32[2,1,32,128], index: 5, kind: output, shape index: {2}]
  %6 = xla_tuple %s3, %s4, %s5
  %s7 = sld [smem:[#allocation0]]
  $region106: #{tpu_custom_call.1} parent=0
    _
  %s9 = ssub.s32 1, %s7
  %s10 = scalar_select 0, %s9, %s7
  $region1: #{tpu_custom_call.1} parent=0
    #allocation2 [shape = 'u8[16384]{0}', space=vmem, size = 0x4000, scoped, tag = 'input window, operand 1']
    #allocation3 [shape = 'u8[16384]{0}', space=vmem, size = 0x4000, scoped, tag = 'input window, operand 2']
    #allocation4 [shape = 's32[2]{0}', space=sflag, size = 0x8, scoped, tag = 'scoped memory for tpu_custom_call.1']
    #allocation5 [shape = 's32[2]{0}', space=sflag, size = 0x8, scoped, tag = 'scoped memory for tpu_custom_call.1']
    #allocation6 [shape = 'u8[1024]{0}', space=vmem, size = 0x400, scoped, tag = 'output window, operand 0']
    #allocation7 [shape = 'u8[32768]{0}', space=vmem, size = 0x8000, scoped, tag = 'output window, operand 1']
    #allocation8 [shape = 's32[2]{0}', space=sflag, size = 0x8, scoped, tag = 'scoped memory for tpu_custom_call.1']
    #allocation9 [shape = 'u8[32768]{0}', space=vmem, size = 0x8000, scoped, tag = 'output window, operand 2']
    %11 = vsyncpa [#allocation4], 0
    %s12 = scalar_lea.sflag [#allocation4], 1
    %13 = vsyncpa %s12, 0
    %14 = vsyncpa [#allocation5], 0
    %s15 = scalar_lea.sflag [#allocation5], 1
    %16 = vsyncpa %s15, 0
    %17 = vsyncpa [#allocation8], 0
    %s18 = scalar_lea.sflag [#allocation8], 1
    %19 = vsyncpa %s18, 0
    loop: start=0, step=1, limit=4
    $region2: #{tpu_custom_call.1} parent=1 // loop_pre_header
      _
    $region3: #{tpu_custom_call.1} parent=1 // loop_header
      %s21 = sphi 0, %s25
      %p22 = scmp.ge.s32.totalorder %s21, 4
      %s28 = sphi 0, %s40
      %s29 = sphi 0, %s36
      %s30 = sphi 0, %s28
      %s31 = sphi 0, %s29
      %s32 = sphi 0, %s30
      %s33 = sphi 0, %s31
      %s41 = sphi 0, %s41
      %s43 = sphi 0, %s41
      %s44 = sphi 0, %s43
      %s58 = sphi 0, %s44
      %s66 = sphi 0, %s68
      %s69 = sphi 0, %s66
      %s70 = sphi 0, %s69
      %s86 = sphi 0, %s70
      %s96 = sphi 0, %s98
      %s99 = sphi 0, %s96
      %s100 = sphi 0, %s99
      %s116 = sphi 0, %s100
      %s124 = sphi 0, %s126
      %s127 = sphi 0, %s124
      %s128 = sphi 0, %s127
      %s144 = sphi 0, %s128
      %s152 = sphi 0, %s154
      %s155 = sphi 0, %s152
      %s156 = sphi 0, %s155
      %s172 = sphi 0, %s156
      %s180 = sphi 0, %s182
      %s183 = sphi 0, %s180
      %s184 = sphi 0, %s183
      %s200 = sphi 0, %s184
    $region4: #{tpu_custom_call.1} parent=1 // loop_header_branch
      %24 = sbr.rel (%p22) target = $region8
    $region5: #{tpu_custom_call.1} parent=1 // loop_body
      %s26 = ssub.s32 %s21, 1
      %s27 = ssub.s32 %s21, 2
      %s34 = sadd.s32 1, %s29
      %p35 = scmp.ge.s32.totalorder %s34, 1
      %s36 = scalar_select %p35, 0, %s34
      %s37 = sadd.s32 1, %s28
      %s38 = scalar_select %p35, %s37, %s28
      %p39 = scmp.ge.s32.totalorder %s38, 2
      %s40 = scalar_select %p39, 0, %s38
      %s42 = sadd.s32 %s41, 1
      %p45 = scmp.eq.s32.totalorder %s21, 1
      %p46 = scmp.ne.s32.totalorder %s41, %s43
      %p47 = scmp.eq.s32.totalorder %s21, 0
      %p48 = por %p46, %p47
      %p49 = scmp.ne.s32.totalorder %s41, %s43
      %p50 = scmp.eq.s32.totalorder %s26, 1
      %p51 = por %p49, %p50
      %p52 = scmp.ne.s32.totalorder %s43, %s44
      %p53 = scmp.eq.s32.totalorder %s26, 0
      %p54 = por %p52, %p53
      %p55 = scmp.ne.s32.totalorder %s43, %s44
      %p56 = scmp.eq.s32.totalorder %s27, 1
      %p57 = por %p55, %p56
      %p59 = scmp.ne.s32.totalorder %s44, %s58
      %p60 = scmp.eq.s32.totalorder %s27, 0
      %p61 = por %p59, %p60
      %s62 = ssub.s32 %s28, %s40
      %s63 = ssub.s32 %s29, %s36
      %s64 = sor.u32 %s62, %s63
      %p65 = scmp.eq.s32.totalorder %s64, 0
      %s67 = sadd.s32 %s66, 1
      %s68 = scalar_select %p65, %s66, %s67
      %p71 = pneg %p65
      %p72 = scmp.eq.s32.totalorder %s21, 1
      %p73 = por %p71, %p72
      %p74 = scmp.ne.s32.totalorder %s66, %s69
      %p75 = scmp.eq.s32.totalorder %s21, 0
      %p76 = por %p74, %p75
      %p77 = scmp.ne.s32.totalorder %s66, %s69
      %p78 = scmp.eq.s32.totalorder %s26, 1
      %p79 = por %p77, %p78
      %p80 = scmp.ne.s32.totalorder %s69, %s70
      %p81 = scmp.eq.s32.totalorder %s26, 0
      %p82 = por %p80, %p81
      %p83 = scmp.ne.s32.totalorder %s69, %s70
      %p84 = scmp.eq.s32.totalorder %s27, 1
      %p85 = por %p83, %p84
      %p87 = scmp.ne.s32.totalorder %s70, %s86
      %p88 = scmp.eq.s32.totalorder %s27, 0
      %p89 = por %p87, %p88
      %s90 = sadd.s32 %s29, 1
      %s91 = sadd.s32 %s36, 1
      %s92 = ssub.s32 %s28, %s40
      %s93 = ssub.s32 %s90, %s91
      %s94 = sor.u32 %s92, %s93
      %p95 = scmp.eq.s32.totalorder %s94, 0
      %s97 = sadd.s32 %s96, 1
      %s98 = scalar_select %p95, %s96, %s97
      %p101 = pneg %p95
      %p102 = scmp.eq.s32.totalorder %s21, 1
      %p103 = por %p101, %p102
      %p104 = scmp.ne.s32.totalorder %s96, %s99
      %p105 = scmp.eq.s32.totalorder %s21, 0
      %p106 = por %p104, %p105
      %p107 = scmp.ne.s32.totalorder %s96, %s99
      %p108 = scmp.eq.s32.totalorder %s26, 1
      %p109 = por %p107, %p108
      %p110 = scmp.ne.s32.totalorder %s99, %s100
      %p111 = scmp.eq.s32.totalorder %s26, 0
      %p112 = por %p110, %p111
      %p113 = scmp.ne.s32.totalorder %s99, %s100
      %p114 = scmp.eq.s32.totalorder %s27, 1
      %p115 = por %p113, %p114
      %p117 = scmp.ne.s32.totalorder %s100, %s116
      %p118 = scmp.eq.s32.totalorder %s27, 0
      %p119 = por %p117, %p118
      %s120 = ssub.s32 %s28, %s40
      %s121 = ssub.s32 %s29, %s36
      %s122 = sor.u32 %s120, %s121
      %p123 = scmp.eq.s32.totalorder %s122, 0
      %s125 = sadd.s32 %s124, 1
      %s126 = scalar_select %p123, %s124, %s125
      %p129 = pneg %p123
      %p130 = scmp.eq.s32.totalorder %s21, 1
      %p131 = por %p129, %p130
      %p132 = scmp.ne.s32.totalorder %s124, %s127
      %p133 = scmp.eq.s32.totalorder %s21, 0
      %p134 = por %p132, %p133
      %p135 = scmp.ne.s32.totalorder %s124, %s127
      %p136 = scmp.eq.s32.totalorder %s26, 1
      %p137 = por %p135, %p136
      %p138 = scmp.ne.s32.totalorder %s127, %s128
      %p139 = scmp.eq.s32.totalorder %s26, 0
      %p140 = por %p138, %p139
      %p141 = scmp.ne.s32.totalorder %s127, %s128
      %p142 = scmp.eq.s32.totalorder %s27, 1
      %p143 = por %p141, %p142
      %p145 = scmp.ne.s32.totalorder %s128, %s144
      %p146 = scmp.eq.s32.totalorder %s27, 0
      %p147 = por %p145, %p146
      %s148 = ssub.s32 %s28, %s40
      %s149 = ssub.s32 %s29, %s36
      %s150 = sor.u32 %s148, %s149
      %p151 = scmp.eq.s32.totalorder %s150, 0
      %s153 = sadd.s32 %s152, 1
      %s154 = scalar_select %p151, %s152, %s153
      %p157 = pneg %p151
      %p158 = scmp.eq.s32.totalorder %s21, 1
      %p159 = por %p157, %p158
      %p160 = scmp.ne.s32.totalorder %s152, %s155
      %p161 = scmp.eq.s32.totalorder %s21, 0
      %p162 = por %p160, %p161
      %p163 = scmp.ne.s32.totalorder %s152, %s155
      %p164 = scmp.eq.s32.totalorder %s26, 1
      %p165 = por %p163, %p164
      %p166 = scmp.ne.s32.totalorder %s155, %s156
      %p167 = scmp.eq.s32.totalorder %s26, 0
      %p168 = por %p166, %p167
      %p169 = scmp.ne.s32.totalorder %s155, %s156
      %p170 = scmp.eq.s32.totalorder %s27, 1
      %p171 = por %p169, %p170
      %p173 = scmp.ne.s32.totalorder %s156, %s172
      %p174 = scmp.eq.s32.totalorder %s27, 0
      %p175 = por %p173, %p174
      %s176 = ssub.s32 %s28, %s40
      %s177 = ssub.s32 %s29, %s36
      %s178 = sor.u32 %s176, %s177
      %p179 = scmp.eq.s32.totalorder %s178, 0
      %s181 = sadd.s32 %s180, 1
      %s182 = scalar_select %p179, %s180, %s181
      %p185 = pneg %p179
      %p186 = scmp.eq.s32.totalorder %s21, 1
      %p187 = por %p185, %p186
      %p188 = scmp.ne.s32.totalorder %s180, %s183
      %p189 = scmp.eq.s32.totalorder %s21, 0
      %p190 = por %p188, %p189
      %p191 = scmp.ne.s32.totalorder %s180, %s183
      %p192 = scmp.eq.s32.totalorder %s26, 1
      %p193 = por %p191, %p192
      %p194 = scmp.ne.s32.totalorder %s183, %s184
      %p195 = scmp.eq.s32.totalorder %s26, 0
      %p196 = por %p194, %p195
      %p197 = scmp.ne.s32.totalorder %s183, %s184
      %p198 = scmp.eq.s32.totalorder %s27, 1
      %p199 = por %p197, %p198
      %p201 = scmp.ne.s32.totalorder %s184, %s200
      %p202 = scmp.eq.s32.totalorder %s27, 0
      %p203 = por %p201, %p202
      %p204 = scmp.le.s32.totalorder 1, %s21
      %p205 = scmp.lt.s32.totalorder %s21, 3
      %p206 = pnand %p204, %p205
      %p207 = pneg %p206
      // Predicated region
      $region9: #{tpu_custom_call.1} parent=5 // pred_check
        _
      $region10: #{tpu_custom_call.1} parent=5 // pred_check_branch
        %209 = sbr.rel (%p206) target = $region12
      $region11: #{tpu_custom_call.1} parent=5 // pred_region
        %s210 = ssub.s32 %s21, 1
        // Predicated region
        $region13: #{tpu_custom_call.1} parent=11 // pred_check
          %p211 = pneg %p54
        $region14: #{tpu_custom_call.1} parent=11 // pred_check_branch
          %213 = sbr.rel (%p211) target = $region16
        $region15: #{tpu_custom_call.1} parent=11 // pred_region
          _
        $region16: #{tpu_custom_call.1} parent=11 // pred_fallthru
          _
      $region12: #{tpu_custom_call.1} parent=5 // pred_fallthru
        _
      %p214 = scmp.lt.s32.totalorder %s21, 2
      // Predicated region
      $region17: #{tpu_custom_call.1} parent=5 // pred_check
        %p215 = pneg %p214
      $region18: #{tpu_custom_call.1} parent=5 // pred_check_branch
        %217 = sbr.rel (%p215) target = $region20
      $region19: #{tpu_custom_call.1} parent=5 // pred_region
        // Predicated region
        $region21: #{tpu_custom_call.1} parent=19 // pred_check
          %p218 = pneg %p76
        $region22: #{tpu_custom_call.1} parent=19 // pred_check_branch
          %220 = sbr.rel (%p218) target = $region24
        $region23: #{tpu_custom_call.1} parent=19 // pred_region
          %s221 = sand.u32 %s66, 1
          %s222 = sand.u32 %s66, 1
          %s223 = smul.addr %s222, 16
          %s224 = scalar_lea.vmem [#allocation2], %s223
          %s225 = smul.addr %s28, 8
          %s226 = sadd.s32 %s29, %s225
          %s227 = smul.addr %s226, 4
          %s228 = scalar_lea.vmem %s1, %s227
          // Predicated region
          $region25: #{tpu_custom_call.1} parent=23 // pred_check
            _
          $region26: #{tpu_custom_call.1} parent=23 // pred_check_branch
            %230 = sbr.rel (0) target = $region28
          $region27: #{tpu_custom_call.1} parent=23 // pred_region
            // Predicated region
            $region29: #{tpu_custom_call.1} parent=27 // pred_check
              _
            $region30: #{tpu_custom_call.1} parent=27 // pred_check_branch
              %232 = sbr.rel target = $region32
            $region31: #{tpu_custom_call.1} parent=27 // pred_region
              // Predicated region
              $region44: #{tpu_custom_call.1} parent=31 // pred_check
                _
              $region45: #{tpu_custom_call.1} parent=31 // pred_check_branch
                %254 = sbr.rel (0) target = $region47
              $region46: #{tpu_custom_call.1} parent=31 // pred_region
                loop: start=0, step=1, limit=1
                $region48: #{tpu_custom_call.1} parent=46 // loop_pre_header
                  _
                $region49: #{tpu_custom_call.1} parent=46 // loop_header
                  %s256 = sphi 0, %s260
                  %p257 = scmp.ge.s32.totalorder %s256, 1
                  %s261 = sphi %s228, %s228
                  %s262 = sphi %s224, %s224
                $region50: #{tpu_custom_call.1} parent=46 // loop_header_branch
                  %259 = sbr.rel (%p257) target = $region54
                $region51: #{tpu_custom_call.1} parent=46 // loop_body
                  _
                $region52: #{tpu_custom_call.1} parent=46 // loop_footer
                  %s260 = sadd.s32 1, %s256
                $region53: #{tpu_custom_call.1} parent=46 // loop_footer_branch
                  %255 = sbr.rel target = $region49
                $region54: #{tpu_custom_call.1} parent=46 // loop_exit
                  _
                %s264 = ssub.s32 16, 1
                loop: start=0, step=1, limit=1
                $region55: #{tpu_custom_call.1} parent=46 // loop_pre_header
                  _
                $region56: #{tpu_custom_call.1} parent=46 // loop_header
                  %s266 = sphi 0, %s270
                  %p267 = scmp.ge.s32.totalorder %s266, 1
                  %s271 = sphi %s228, %s228
                  %s272 = sphi %s224, %s224
                $region57: #{tpu_custom_call.1} parent=46 // loop_header_branch
                  %269 = sbr.rel (%p267) target = $region61
                $region58: #{tpu_custom_call.1} parent=46 // loop_body
                  %v273 = vld [vmem:[%s271] sm:%s264]
                  %274 = vst [vmem:[%s272] sm:%s264] %v273
                  %v275 = vld [vmem:[%s271 + $0x8] sm:%s264]
                  %276 = vst [vmem:[%s272 + $0x4] sm:%s264] %v275
                  %v277 = vld [vmem:[%s271 + $0x10] sm:%s264]
                  %278 = vst [vmem:[%s272 + $0x8] sm:%s264] %v277
                  %v279 = vld [vmem:[%s271 + $0x18] sm:%s264]
                  %280 = vst [vmem:[%s272 + $0xc] sm:%s264] %v279
                $region59: #{tpu_custom_call.1} parent=46 // loop_footer
                  %s270 = sadd.s32 1, %s266
                $region60: #{tpu_custom_call.1} parent=46 // loop_footer_branch
                  %265 = sbr.rel target = $region56
                $region61: #{tpu_custom_call.1} parent=46 // loop_exit
                  _
              $region47: #{tpu_custom_call.1} parent=31 // pred_fallthru
                _
            $region32: #{tpu_custom_call.1} parent=27 // pred_fallthru
              _
            // Predicated region
            $region33: #{tpu_custom_call.1} parent=27 // pred_check
              _
            $region34: #{tpu_custom_call.1} parent=27 // pred_check_branch
              %234 = sbr.rel (0) target = $region36
            $region35: #{tpu_custom_call.1} parent=27 // pred_region
              %s236 = ssub.s32 16, 1
              loop: start=0, step=1, limit=1
              $region37: #{tpu_custom_call.1} parent=35 // loop_pre_header
                _
              $region38: #{tpu_custom_call.1} parent=35 // loop_header
                %s238 = sphi 0, %s242
                %p239 = scmp.ge.s32.totalorder %s238, 1
                %s243 = sphi %s228, %s228
                %s244 = sphi %s224, %s224
              $region39: #{tpu_custom_call.1} parent=35 // loop_header_branch
                %241 = sbr.rel (%p239) target = $region43
              $region40: #{tpu_custom_call.1} parent=35 // loop_body
                %v245 = vld [vmem:[%s243] sm:%s236]
                %246 = vst [vmem:[%s244] sm:%s236] %v245
                %v247 = vld [vmem:[%s243 + $0x8] sm:%s236]
                %248 = vst [vmem:[%s244 + $0x4] sm:%s236] %v247
                %v249 = vld [vmem:[%s243 + $0x10] sm:%s236]
                %250 = vst [vmem:[%s244 + $0x8] sm:%s236] %v249
                %v251 = vld [vmem:[%s243 + $0x18] sm:%s236]
                %252 = vst [vmem:[%s244 + $0xc] sm:%s236] %v251
              $region41: #{tpu_custom_call.1} parent=35 // loop_footer
                %s242 = sadd.s32 1, %s238
              $region42: #{tpu_custom_call.1} parent=35 // loop_footer_branch
                %237 = sbr.rel target = $region38
              $region43: #{tpu_custom_call.1} parent=35 // loop_exit
                _
            $region36: #{tpu_custom_call.1} parent=27 // pred_fallthru
              _
          $region28: #{tpu_custom_call.1} parent=23 // pred_fallthru
            _
          %281 = vnop
        $region24: #{tpu_custom_call.1} parent=19 // pred_fallthru
          _
        // Predicated region
        $region62: #{tpu_custom_call.1} parent=19 // pred_check
          %p282 = pneg %p106
        $region63: #{tpu_custom_call.1} parent=19 // pred_check_branch
          %284 = sbr.rel (%p282) target = $region65
        $region64: #{tpu_custom_call.1} parent=19 // pred_region
          %s285 = sand.u32 %s96, 1
          %s286 = scalar_lea.sflag [#allocation4], %s285
          %s287 = sand.u32 %s96, 1
          %s288 = smul.addr %s287, 16
          %s289 = scalar_lea.vmem [#allocation3], %s288
          %s290 = sadd.s32 %s29, 1
          %292 = vsyncadd %s286, 0
          %s293 = smul.addr %s28, 8
          %s294 = sadd.s32 %s290, %s293
          %s295 = smul.addr %s294, 4
          %s296 = scalar_lea.hbm %s2, %s295
          %s297 = sshll.u32 %s296, 4
          %s298 = int_to_ptr.hbm [resolvable:$true] %s297
          %s299 = sshll.u32 %s289, 4
          %s300 = int_to_ptr.vmem [resolvable:$true] %s299
          %305 = dma.hbm_to_vmem [thread:$0]  %s298, 256, %s300, %s286, 128, 64, 4
        $region65: #{tpu_custom_call.1} parent=19 // pred_fallthru
          _
      $region20: #{tpu_custom_call.1} parent=5 // pred_fallthru
        _
      %p306 = scmp.le.s32.totalorder 1, %s21
      %p307 = scmp.lt.s32.totalorder %s21, 3
      %p308 = pnand %p306, %p307
      %p309 = pneg %p308
      // Predicated region
      $region66: #{tpu_custom_call.1} parent=5 // pred_check
        _
      $region67: #{tpu_custom_call.1} parent=5 // pred_check_branch
        %311 = sbr.rel (%p308) target = $region69
      $region68: #{tpu_custom_call.1} parent=5 // pred_region
        %s312 = ssub.s32 %s21, 1
        %s313 = sand.u32 %s69, 1
        %s314 = sand.u32 %s69, 1
        %s315 = smul.addr %s314, 16
        %s316 = scalar_lea.vmem [#allocation2], %s315
        // Predicated region
        $region70: #{tpu_custom_call.1} parent=68 // pred_check
          %p317 = pneg %p82
        $region71: #{tpu_custom_call.1} parent=68 // pred_check_branch
          %319 = sbr.rel (%p317) target = $region73
        $region72: #{tpu_custom_call.1} parent=68 // pred_region
          _
        $region73: #{tpu_custom_call.1} parent=68 // pred_fallthru
          _
        %s320 = sand.u32 %s99, 1
        %s321 = scalar_lea.sflag [#allocation4], %s320
        %s322 = sand.u32 %s99, 1
        %s323 = smul.addr %s322, 16
        %s324 = scalar_lea.vmem [#allocation3], %s323
        // Predicated region
        $region74: #{tpu_custom_call.1} parent=68 // pred_check
          %p325 = pneg %p112
        $region75: #{tpu_custom_call.1} parent=68 // pred_check_branch
          %327 = sbr.rel (%p325) target = $region77
        $region76: #{tpu_custom_call.1} parent=68 // pred_region
          %329 = dma.done %s321, 256
        $region77: #{tpu_custom_call.1} parent=68 // pred_fallthru
          _
        %p330 = pneg %p54
        %p331 = pneg %p51
        %s332 = sand.u32 %s69, 1
        %s333 = sand.u32 %s69, 1
        %s334 = smul.addr %s333, 16
        %s335 = scalar_lea.vmem [#allocation2], %s334
        %p336 = pneg %p82
        %p337 = pneg %p79
        %s338 = sand.u32 %s99, 1
        %s339 = scalar_lea.sflag [#allocation4], %s338
        %s340 = sand.u32 %s99, 1
        %s341 = smul.addr %s340, 16
        %s342 = scalar_lea.vmem [#allocation3], %s341
        %p343 = pneg %p112
        %p344 = pneg %p109
        %p345 = pneg %p140
        %p346 = pneg %p137
        %s347 = sand.u32 %s127, 1
        %s348 = scalar_lea.sflag [#allocation5], %s347
        %s349 = sand.u32 %s127, 1
        %s350 = scalar_lea.vmem [#allocation6], %s349
        %p351 = pneg %p168
        %p352 = pneg %p165
        %s353 = sand.u32 %s26, 1
        %s354 = scalar_lea.sflag [#allocation8], %s353
        %s355 = sand.u32 %s155, 1
        %s356 = smul.addr %s355, 32
        %s357 = scalar_lea.vmem [#allocation7], %s356
        %p358 = pneg %p196
        %p359 = pneg %p193
        %s360 = sand.u32 %s26, 1
        %s361 = scalar_lea.sflag [#allocation8], %s360
        %s362 = sand.u32 %s183, 1
        %s363 = smul.addr %s362, 32
        %s364 = scalar_lea.vmem [#allocation9], %s363
        %s365 = sadd.s32 %s31, 1
        %v367 = vld [vmem:[%s316] sm:$0xf]
        %v368 = vld [vmem:[%s316 + $0x4] sm:$0xf]
        %v369 = vld [vmem:[%s316 + $0x8] sm:$0xf]
        %v370 = vld [vmem:[%s316 + $0xc] sm:$0xf]
        %v371 = vld [vmem:[%s0] sm:$0xf]
        %v372 = vld [vmem:[%s0 + $0x4] sm:$0xf]
        %v373 = vld [vmem:[%s0 + $0x8] sm:$0xf]
        %v374 = vld [vmem:[%s0 + $0xc] sm:$0xf]
        %v375 = vld [vmem:[%s0 + $0x10] sm:$0xf]
        %v376 = vld [vmem:[%s0 + $0x14] sm:$0xf]
        %v377 = vld [vmem:[%s0 + $0x18] sm:$0xf]
        %v378 = vld [vmem:[%s0 + $0x1c] sm:$0xf]
        %v379 = vld [vmem:[%s0 + $0x20] sm:$0xf]
        %v380 = vld [vmem:[%s0 + $0x24] sm:$0xf]
        %v381 = vld [vmem:[%s324] sm:$0xf]
        %v382 = vld [vmem:[%s324 + $0x4] sm:$0xf]
        %v383 = vld [vmem:[%s324 + $0x8] sm:$0xf]
        %v384 = vld [vmem:[%s324 + $0xc] sm:$0xf]
        %v389 = vunpack.c.l.b16 %v367
        %v390 = vunpack.c.l.b16 %v368
        %v391 = vunpack.c.l.b16 %v369
        %v392 = vunpack.c.l.b16 %v370
        %v393 = vpack.c.b16 %v390, %v389
        %v394 = vpack.c.b16 %v392, %v391
        %v399 = vunpack.c.l.b16 %v381
        %v400 = vunpack.c.l.b16 %v382
        %v401 = vunpack.c.l.b16 %v383
        %v402 = vunpack.c.l.b16 %v384
        %v403 = vpack.c.b16 %v400, %v399
        %v404 = vpack.c.b16 %v402, %v401
        %s405 = scalar_lea.vmem %s0, 40
        %v406 = vld [vmem:[%s405] sm:$0xf]
        %v407 = vld [vmem:[%s405 + $0x4] sm:$0xf]
        %v408 = vld [vmem:[%s405 + $0x8] sm:$0xf]
        %v409 = vld [vmem:[%s405 + $0xc] sm:$0xf]
        %v410 = vld [vmem:[%s405 + $0x10] sm:$0xf]
        %v411 = vld [vmem:[%s405 + $0x14] sm:$0xf]
        %v412 = vld [vmem:[%s405 + $0x18] sm:$0xf]
        %v413 = vld [vmem:[%s405 + $0x1c] sm:$0xf]
        %v414 = vld [vmem:[%s405 + $0x20] sm:$0xf]
        %v415 = vld [vmem:[%s405 + $0x24] sm:$0xf]
        %v426 = vunpack.c.l.b16 %v406
        %v427 = vunpack.c.l.b16 %v407
        %v428 = vunpack.c.l.b16 %v408
        %v429 = vunpack.c.l.b16 %v409
        %v430 = vunpack.c.l.b16 %v410
        %v431 = vunpack.c.l.b16 %v411
        %v432 = vunpack.c.l.b16 %v412
        %v433 = vunpack.c.l.b16 %v413
        %v434 = vunpack.c.l.b16 %v414
        %v435 = vunpack.c.l.b16 %v415
        %v436 = vpack.c.b16 %v427, %v426
        %v437 = vpack.c.b16 %v429, %v428
        %v438 = vpack.c.b16 %v431, %v430
        %v439 = vpack.c.b16 %v433, %v432
        %v440 = vpack.c.b16 %v435, %v434
        %441 = vrot.lane.b32.xlu0 %v393, 127
        %v442 = vpop.permute.xlu0 %441
        %443 = vrot.lane.b32.xlu0 %v403, 127
        %v444 = vpop.permute.xlu0 %443
        %445 = vrot.lane.b32.xlu0 %v394, 127
        %v446 = vpop.permute.xlu0 %445
        %447 = vrot.lane.b32.xlu0 %v404, 127
        %v448 = vpop.permute.xlu0 %447
        %vm449 = vcmask 1039360
        %v450 = vsel %vm449, %v442, %v444
        %v451 = vsel %vm449, %v446, %v448
        %vm454 = vcmask 261120
        %v456 = vsel %vm454, %v436, 0
        %v459 = vsel %vm454, %v437, 0
        %v462 = vsel %vm454, %v438, 0
        %v465 = vsel %vm454, %v439, 0
        %v468 = vsel %vm454, %v440, 0
        %470 = vmatpush.bf16.msra.mxu0 0
        %471 = vmatpush.bf16.msra.mxu0 0
        %472 = vmatpush.bf16.msra.mxu0 0
        %473 = vmatpush.bf16.msra.mxu0 0
        %474 = vmatpush.bf16.msra.mxu0 0
        %475 = vmatpush.bf16.msra.mxu0 0
        %476 = vmatpush.bf16.msra.mxu0 %v451
        %477 = vmatpush.bf16.msra.mxu0 %v450
        %478 = vmatmul.bf16.gmra.mxu0 %v456
        %v479 = vpop.f32.mrf.mxu0
        %v480 = vadd.f32 0.0, %v479
        %v481 = vpop.f32.mrf.mxu0
        %482 = vmatmul.bf16.gmra.mxu0 %v459
        %v483 = vpop.f32.mrf.mxu0
        %v484 = vadd.f32 0.0, %v483
        %v485 = vpop.f32.mrf.mxu0
        %v486 = vadd.f32 0.0, %v485
        %487 = vmatmul.bf16.gmra.mxu0 %v462
        %v488 = vpop.f32.mrf.mxu0
        %v489 = vadd.f32 0.0, %v488
        %v490 = vpop.f32.mrf.mxu0
        %v491 = vadd.f32 0.0, %v490
        %492 = vmatmul.bf16.gmra.mxu0 %v465
        %v493 = vpop.f32.mrf.mxu0
        %v494 = vadd.f32 0.0, %v493
        %v495 = vpop.f32.mrf.mxu0
        %v496 = vadd.f32 0.0, %v495
        %497 = vmatmul.bf16.gmra.mxu0 %v468
        %v498 = vpop.f32.mrf.mxu0
        %v499 = vadd.f32 0.0, %v498
        %v500 = vpop.f32.mrf.mxu0
        %v501 = vadd.f32 0.0, %v500
        %502 = vdwg.mxu0
        %v513 = vunpack.c.l.b16 %v371
        %v514 = vunpack.c.l.b16 %v372
        %v515 = vunpack.c.l.b16 %v373
        %v516 = vunpack.c.l.b16 %v374
        %v517 = vunpack.c.l.b16 %v375
        %v518 = vunpack.c.l.b16 %v376
        %v519 = vunpack.c.l.b16 %v377
        %v520 = vunpack.c.l.b16 %v378
        %v521 = vunpack.c.l.b16 %v379
        %v522 = vunpack.c.l.b16 %v380
        %v523 = vpack.c.b16 %v514, %v513
        %v524 = vpack.c.b16 %v516, %v515
        %v525 = vpack.c.b16 %v518, %v517
        %v526 = vpack.c.b16 %v520, %v519
        %v527 = vpack.c.b16 %v522, %v521
        %v531 = vsel %vm454, %v523, 0
        %v534 = vsel %vm454, %v524, 0
        %v537 = vsel %vm454, %v525, 0
        %v540 = vsel %vm454, %v526, 0
        %v543 = vsel %vm454, %v527, 0
        %545 = vmatpush.bf16.msra.mxu0 0
        %546 = vmatpush.bf16.msra.mxu0 0
        %547 = vmatpush.bf16.msra.mxu0 0
        %548 = vmatpush.bf16.msra.mxu0 0
        %549 = vmatpush.bf16.msra.mxu0 0
        %550 = vmatpush.bf16.msra.mxu0 0
        %551 = vmatpush.bf16.msra.mxu0 %v394
        %552 = vmatpush.bf16.msra.mxu0 %v393
        %553 = vmatmul.bf16.gmra.mxu0 %v531
        %v554 = vpop.f32.mrf.mxu0
        %v555 = vadd.f32 %v480, %v554
        %v556 = vpop.f32.mrf.mxu0
        %557 = vmatmul.bf16.gmra.mxu0 %v534
        %v558 = vpop.f32.mrf.mxu0
        %v559 = vadd.f32 %v484, %v558
        %v560 = vpop.f32.mrf.mxu0
        %v561 = vadd.f32 %v486, %v560
        %562 = vmatmul.bf16.gmra.mxu0 %v537
        %v563 = vpop.f32.mrf.mxu0
        %v564 = vadd.f32 %v489, %v563
        %v565 = vpop.f32.mrf.mxu0
        %v566 = vadd.f32 %v491, %v565
        %567 = vmatmul.bf16.gmra.mxu0 %v540
        %v568 = vpop.f32.mrf.mxu0
        %v569 = vadd.f32 %v494, %v568
        %v570 = vpop.f32.mrf.mxu0
        %v571 = vadd.f32 %v496, %v570
        %572 = vmatmul.bf16.gmra.mxu0 %v543
        %v573 = vpop.f32.mrf.mxu0
        %v574 = vadd.f32 %v499, %v573
        %v575 = vpop.f32.mrf.mxu0
        %v576 = vadd.f32 %v501, %v575
        %577 = vdwg.mxu0
        %578 = vst [vmem:[%s350] sm:$0x1] %v555
        %579 = vst [vmem:[%s357] sm:$0xff] %v559
        %580 = vst [vmem:[%s357 + $0x8] sm:$0xff] %v561
        %581 = vst [vmem:[%s357 + $0x10] sm:$0xff] %v564
        %582 = vst [vmem:[%s357 + $0x18] sm:$0xff] %v566
        %583 = vst [vmem:[%s364] sm:$0xff] %v569
        %584 = vst [vmem:[%s364 + $0x8] sm:$0xff] %v571
        %585 = vst [vmem:[%s364 + $0x10] sm:$0xff] %v574
        %586 = vst [vmem:[%s364 + $0x18] sm:$0xff] %v576
        %s587 = sand.u32 %s127, 1
        %s588 = scalar_lea.sflag [#allocation5], %s587
        %s589 = sand.u32 %s127, 1
        %s590 = scalar_lea.vmem [#allocation6], %s589
        %s591 = sand.u32 %s26, 1
        %s592 = scalar_lea.sflag [#allocation8], %s591
        %s593 = sand.u32 %s155, 1
        %s594 = smul.addr %s593, 32
        %s595 = scalar_lea.vmem [#allocation7], %s594
        %s596 = sand.u32 %s26, 1
        %s597 = scalar_lea.sflag [#allocation8], %s596
        %s598 = sand.u32 %s183, 1
        %s599 = smul.addr %s598, 32
        %s600 = scalar_lea.vmem [#allocation9], %s599
        // Predicated region
        $region78: #{tpu_custom_call.1} parent=68 // pred_check
          %p601 = pneg %p137
        $region79: #{tpu_custom_call.1} parent=68 // pred_check_branch
          %603 = sbr.rel (%p601) target = $region81
        $region80: #{tpu_custom_call.1} parent=68 // pred_region
          %605 = vsyncadd %s588, 0
          %s606 = sadd.s32 %s31, %s30
          %s607 = scalar_lea.hbm %s3, %s606
          %s609 = sshll.u32 %s590, 4
          %s610 = int_to_ptr.vmem [resolvable:$true] %s609
          %s611 = sshll.u32 %s607, 4
          %s612 = int_to_ptr.hbm [resolvable:$true] %s611
          %614 = dma.vmem_to_hbm [thread:$0]  %s610, 16, %s612, %s588
        $region81: #{tpu_custom_call.1} parent=68 // pred_fallthru
          _
        // Predicated region
        $region82: #{tpu_custom_call.1} parent=68 // pred_check
          %p615 = pneg %p165
        $region83: #{tpu_custom_call.1} parent=68 // pred_check_branch
          %617 = sbr.rel (%p615) target = $region85
        $region84: #{tpu_custom_call.1} parent=68 // pred_region
          %619 = vsyncadd %s592, 0
          %s620 = smul.addr %s30, 4
          %s621 = sadd.s32 %s31, %s620
          %s622 = smul.addr %s621, 8
          %s623 = scalar_lea.hbm %s4, %s622
          %s624 = sshll.u32 %s595, 4
          %s625 = int_to_ptr.vmem [resolvable:$true] %s624
          %s626 = sshll.u32 %s623, 4
          %s627 = int_to_ptr.hbm [resolvable:$true] %s626
          %632 = dma.vmem_to_hbm [thread:$0]  %s625, 512, %s627, %s592, 128, 128, 8
        $region85: #{tpu_custom_call.1} parent=68 // pred_fallthru
          _
        // Predicated region
        $region86: #{tpu_custom_call.1} parent=68 // pred_check
          %p633 = pneg %p193
        $region87: #{tpu_custom_call.1} parent=68 // pred_check_branch
          %635 = sbr.rel (%p633) target = $region89
        $region88: #{tpu_custom_call.1} parent=68 // pred_region
          %637 = vsyncadd %s597, 0
          %s638 = smul.addr %s30, 4
          %s639 = sadd.s32 %s31, %s638
          %s640 = smul.addr %s639, 8
          %s641 = scalar_lea.hbm %s5, %s640
          %s642 = sshll.u32 %s600, 4
          %s643 = int_to_ptr.vmem [resolvable:$true] %s642
          %s644 = sshll.u32 %s641, 4
          %s645 = int_to_ptr.hbm [resolvable:$true] %s644
          %650 = dma.vmem_to_hbm [thread:$0]  %s643, 512, %s645, %s597, 128, 128, 8
        $region89: #{tpu_custom_call.1} parent=68 // pred_fallthru
          _
      $region69: #{tpu_custom_call.1} parent=5 // pred_fallthru
        _
      %p651 = scmp.le.s32.totalorder 2, %s21
      // Predicated region
      $region90: #{tpu_custom_call.1} parent=5 // pred_check
        %p652 = pneg %p651
      $region91: #{tpu_custom_call.1} parent=5 // pred_check_branch
        %654 = sbr.rel (%p652) target = $region93
      $region92: #{tpu_custom_call.1} parent=5 // pred_region
        %s655 = ssub.s32 %s21, 2
        // Predicated region
        $region94: #{tpu_custom_call.1} parent=92 // pred_check
          %p656 = pneg %p143
        $region95: #{tpu_custom_call.1} parent=92 // pred_check_branch
          %658 = sbr.rel (%p656) target = $region97
        $region96: #{tpu_custom_call.1} parent=92 // pred_region
          %s659 = sand.u32 %s128, 1
          %s660 = scalar_lea.sflag [#allocation5], %s659
          %s661 = sand.u32 %s128, 1
          %s662 = scalar_lea.vmem [#allocation6], %s661
          %664 = dma.done %s660, 16
        $region97: #{tpu_custom_call.1} parent=92 // pred_fallthru
          _
        // Predicated region
        $region98: #{tpu_custom_call.1} parent=92 // pred_check
          %p665 = pneg %p171
        $region99: #{tpu_custom_call.1} parent=92 // pred_check_branch
          %667 = sbr.rel (%p665) target = $region101
        $region100: #{tpu_custom_call.1} parent=92 // pred_region
          %s668 = sand.u32 %s27, 1
          %s669 = scalar_lea.sflag [#allocation8], %s668
          %s670 = sand.u32 %s156, 1
          %s671 = smul.addr %s670, 32
          %s672 = scalar_lea.vmem [#allocation7], %s671
          %674 = dma.done %s669, 512
        $region101: #{tpu_custom_call.1} parent=92 // pred_fallthru
          _
        // Predicated region
        $region102: #{tpu_custom_call.1} parent=92 // pred_check
          %p675 = pneg %p199
        $region103: #{tpu_custom_call.1} parent=92 // pred_check_branch
          %677 = sbr.rel (%p675) target = $region105
        $region104: #{tpu_custom_call.1} parent=92 // pred_region
          %s678 = sand.u32 %s27, 1
          %s679 = scalar_lea.sflag [#allocation8], %s678
          %s680 = sand.u32 %s184, 1
          %s681 = smul.addr %s680, 32
          %s682 = scalar_lea.vmem [#allocation9], %s681
          %684 = dma.done %s679, 512
        $region105: #{tpu_custom_call.1} parent=92 // pred_fallthru
          _
      $region93: #{tpu_custom_call.1} parent=5 // pred_fallthru
        _
    $region6: #{tpu_custom_call.1} parent=1 // loop_footer
      %s25 = sadd.s32 1, %s21
    $region7: #{tpu_custom_call.1} parent=1 // loop_footer_branch
      %20 = sbr.rel target = $region3
    $region8: #{tpu_custom_call.1} parent=1 // loop_exit
      _
    %685 = vsyncpa [#allocation4], 1
    %s686 = scalar_lea.sflag [#allocation4], 1
    %687 = vsyncpa %s686, 1
    %688 = vsyncpa [#allocation5], 1
    %s689 = scalar_lea.sflag [#allocation5], 1
    %690 = vsyncpa %s689, 1
    %691 = vsyncpa [#allocation8], 1
    %s692 = scalar_lea.sflag [#allocation8], 1
    %693 = vsyncpa %s692, 1

</llo_original>
